<compile_context>
chip_gen: v5e
topology: v5e:2x2
jax: 0.10.0
libtpu: 0.0.40
codegen_flags: <defaults>
</compile_context>

<pallas_src>
import functools

import jax
import jax.numpy as jnp
from jax import lax
from jax.experimental import pallas as pl
from jax.experimental.pallas import tpu as pltpu

HID = 128                 # fused hidden width: lanes 0-63 actor, 64-127 critic
OUT_W = 8                 # narrow output slab width (only 3 lanes live)
LOGP_LANE, VALUE_LANE, ENT_LANE = 0, 1, 2
MAX_TB = 4096             # VMEM-safe batch-tile cap (v7x: ~18 MiB live at 4096)


def _round_up(x, m):
    return (x + m - 1) // m * m


# ----------------------------------------------------------------------------
# kernel
# ----------------------------------------------------------------------------
def _fused_eval_kernel(xin_ref, w_ref, out_ref, *, state_dim, n_action, in_pad):
    x = xin_ref[...]                                   # (TB, in_pad) f32

    # static, sublane-aligned slices of the packed weight/bias slab
    w1 = w_ref[pl.ds(0, in_pad), :]                    # (in_pad, 128) (bias row folded)
    w2 = w_ref[pl.ds(in_pad, HID), :]                  # (128, 128) block-diag
    w3 = w_ref[pl.ds(in_pad + HID, HID), :]            # (128, 128)
    b_all = w_ref[pl.ds(in_pad + 2 * HID, 8), :]       # one aligned (8, 128) load
    b2 = b_all[0:1, :]                                 # (1, 128)
    b3 = b_all[1:2, :]                                 # (1, 128)

    # fused actor+critic MLP (action/pad lanes of x hit zero rows of w1;
    # the constant-1 lane picks up the layer-1 biases)
    h1 = jnp.tanh(jnp.dot(x, w1, preferred_element_type=jnp.float32))
    h2 = jnp.tanh(jnp.dot(h1, w2, preferred_element_type=jnp.float32) + b2)
    y3 = jnp.dot(h2, w3, preferred_element_type=jnp.float32) + b3     # (TB, 128)
    # y3 lanes: 0..A-1 actor logits, lane A critic value, rest zero.

    lane = lax.broadcasted_iota(jnp.int32, y3.shape, 1)               # (TB, 128)
    is_act = lane < n_action
    neg_big = jnp.float32(-1e30)

    # numerically stable log-softmax over the action lanes only
    m = jnp.max(jnp.where(is_act, y3, neg_big), axis=-1, keepdims=True)
    z = jnp.where(is_act, y3 - m, neg_big)             # -1e30 on non-action lanes
    e = jnp.exp(z)                                     # exactly 0 off action lanes
    denom = jnp.sum(e, axis=-1, keepdims=True)
    logp_all = z - jnp.log(denom)                      # valid on action lanes

    # Categorical.log_prob(action); action is packed as feature lane `state_dim`
    a_i = x[:, state_dim:state_dim + 1].astype(jnp.int32)             # (TB, 1)
    logp_a = jnp.sum(jnp.where(lane == a_i, logp_all, 0.0),
                     axis=-1, keepdims=True)

    # Categorical.entropy() = -(1/denom) * sum(e * logp)   (exact reciprocal to
    # stay within the tight 1e-4 tolerance)
    ent = -jnp.sum(e * logp_all, axis=-1, keepdims=True) * pl.reciprocal(
        denom, approx=False)

    # critic state value lives in lane `n_action`
    val = jnp.sum(jnp.where(lane == n_action, y3, 0.0),
                  axis=-1, keepdims=True)

    # narrow (TB, 8) output slab: lane 0 logp, lane 1 value, lane 2 entropy
    out_lane = lax.broadcasted_iota(jnp.int32, (x.shape[0], OUT_W), 1)
    out_ref[...] = (jnp.where(out_lane == LOGP_LANE, logp_a, 0.0)
                    + jnp.where(out_lane == VALUE_LANE, val, 0.0)
                    + jnp.where(out_lane == ENT_LANE, ent, 0.0))


# ----------------------------------------------------------------------------
# packing / wrapper
# ----------------------------------------------------------------------------
def pack_params(p, state_dim, n_action):
    """Pack all 12 weights/biases into one tile-aligned (rows, 128) f32 slab.

    Input lane layout: 0..state_dim-1 state, state_dim action, state_dim+1
    constant 1.0 (layer-1 bias fold), remainder zero padding."""
    assert n_action + 1 <= 128
    in_pad = max(8, _round_up(state_dim + 2, 8))       # state + action + 1-lane + pad
    rows = in_pad + 2 * HID + 8                        # + aligned bias block
    w = jnp.zeros((rows, HID), jnp.float32)

    # layer 1: [aw1 | cw1]; bias folded into the constant-1 row.
    w = w.at[:state_dim, 0:64].set(p["aw1"])
    w = w.at[:state_dim, 64:128].set(p["cw1"])
    w = w.at[state_dim + 1, 0:64].set(p["ab1"])
    w = w.at[state_dim + 1, 64:128].set(p["cb1"])
    # layer 2: block-diagonal
    r2 = in_pad
    w = w.at[r2:r2 + 64, 0:64].set(p["aw2"])           # actor 64 -> 64
    w = w.at[r2 + 64:r2 + 128, 64:96].set(p["cw2"])    # critic 64 -> 32 (padded)
    # layer 3: actor logits -> lanes 0..A-1, critic value -> lane A
    r3 = in_pad + HID
    w = w.at[r3:r3 + 64, 0:n_action].set(p["aw3"])
    w = w.at[r3 + 64:r3 + 96, n_action:n_action + 1].set(p["cw3"])
    # remaining biases (one aligned 8-row block; rows 0,1 used)
    rb = in_pad + 2 * HID
    w = w.at[rb, 0:64].set(p["ab2"])
    w = w.at[rb, 64:96].set(p["cb2"])
    w = w.at[rb + 1, 0:n_action].set(p["ab3"])
    w = w.at[rb + 1, n_action].set(p["cb3"][0])
    return w, in_pad


def _choose_tile(B, block_b):
    """Pick a batch tile: big enough to amortize per-step overhead, capped for
    VMEM, and split into >=2 grid steps for v7x megacore when B is non-trivial."""
    b8 = _round_up(B, 8)
    tb = min(block_b, MAX_TB, b8)
    if tb == b8 and b8 >= 256:
        tb = _round_up(pl.cdiv(b8, 2), 8)              # 2 "parallel" grid steps
    b_pad = _round_up(b8, tb)
    return tb, b_pad


def actor_critic_evaluate(state, action, packed_w, state_dim, n_action, in_pad,
                          *, block_b=2048):
    """Pallas equivalent of ActorCritic.evaluate(state, action).

    Returns (action_logprobs (B,), state_value (B,), dist_entropy (B,))."""
    B = state.shape[0]
    tb, b_pad = _choose_tile(B, block_b)

    # pack state + action + constant-1 bias lane with one fused concatenate
    cols = [state.astype(jnp.float32),
            action.astype(jnp.float32).reshape(B, 1),
            jnp.ones((B, 1), jnp.float32)]
    used = state_dim + 2
    if in_pad > used:
        cols.append(jnp.zeros((B, in_pad - used), jnp.float32))
    xin = jnp.concatenate(cols, axis=1)
    if b_pad > B:
        xin = jnp.pad(xin, ((0, b_pad - B), (0, 0)))

    kernel = functools.partial(_fused_eval_kernel, state_dim=state_dim,
                               n_action=n_action, in_pad=in_pad)

    cost = pl.CostEstimate(
        flops=2 * b_pad * HID * (in_pad + 2 * HID),
        transcendentals=3 * b_pad * HID,               # 2x tanh + exp (128 wide)
        bytes_accessed=(b_pad * in_pad + packed_w.size + b_pad * OUT_W) * 4,
    )

    out = pl.pallas_call(
        kernel,
        out_shape=jax.ShapeDtypeStruct((b_pad, OUT_W), jnp.float32),
        grid=(b_pad // tb,),
        in_specs=[
            pl.BlockSpec((tb, in_pad), lambda i: (i, 0)),        # batch tile
            pl.BlockSpec(packed_w.shape, lambda i: (0, 0)),      # resident weights
        ],
        out_specs=pl.BlockSpec((tb, OUT_W), lambda i: (i, 0)),   # narrow output
        compiler_params=pltpu.CompilerParams(
            dimension_semantics=("parallel",)),                  # megacore on v7x
        cost_estimate=cost,
    )(xin, packed_w)

    return out[:B, LOGP_LANE], out[:B, VALUE_LANE], out[:B, ENT_LANE]


# ----------------------------------------------------------------------------
# params / reference
# ----------------------------------------------------------------------------
def init_params(key, state_dim, n_action):
    ks = jax.random.split(key, 12)

    def lin(kw, kb, fan_in, fan_out):
        bound = 1.0 / jnp.sqrt(fan_in)
        w = jax.random.uniform(kw, (fan_in, fan_out), jnp.float32, -bound, bound)
        b = jax.random.uniform(kb, (fan_out,), jnp.float32, -bound, bound)
        return w, b

    aw1, ab1 = lin(ks[0], ks[1], state_dim, 64)
    aw2, ab2 = lin(ks[2], ks[3], 64, 64)
    aw3, ab3 = lin(ks[4], ks[5], 64, n_action)
    cw1, cb1 = lin(ks[6], ks[7], state_dim, 64)
    cw2, cb2 = lin(ks[8], ks[9], 64, 32)
    cw3, cb3 = lin(ks[10], ks[11], 32, 1)
    return dict(aw1=aw1, ab1=ab1, aw2=aw2, ab2=ab2, aw3=aw3, ab3=ab3,
                cw1=cw1, cb1=cb1, cw2=cw2, cb2=cb2, cw3=cw3, cb3=cb3)


def reference_evaluate(state, action, p):
    """Pure-JAX reference mirroring the PyTorch module."""
    h = jnp.tanh(state @ p["aw1"] + p["ab1"])
    h = jnp.tanh(h @ p["aw2"] + p["ab2"])
    logits = h @ p["aw3"] + p["ab3"]
    probs = jax.nn.softmax(logits, axis=-1)
    logp_all = jnp.log(probs)
    logp = jnp.take_along_axis(logp_all, action.reshape(-1, 1), axis=-1)[:, 0]
    ent = -jnp.sum(probs * logp_all, axis=-1)
    c = jnp.tanh(state @ p["cw1"] + p["cb1"])
    c = jnp.tanh(c @ p["cw2"] + p["cb2"])
    val = (c @ p["cw3"] + p["cb3"])[:, 0]
    return logp, val, ent


# TODO(synk): act()'s Categorical.sample()/.item() is host-side control flow and
# is intentionally left outside the kernel; evaluate() is the fused hot path.

if __name__ == "__main__":
    STATE_DIM, N_ACTION, BATCH = 3, 2, 8

    key = jax.random.PRNGKey(0)
    k_params, k_state, k_act = jax.random.split(key, 3)

    params = init_params(k_params, STATE_DIM, N_ACTION)
    packed_w, in_pad = pack_params(params, STATE_DIM, N_ACTION)

    state = jax.random.normal(k_state, (BATCH, STATE_DIM), jnp.float32)
    action = jax.random.randint(k_act, (BATCH,), 0, N_ACTION, jnp.int32)

    logp, value, ent = actor_critic_evaluate(
        state, action, packed_w, STATE_DIM, N_ACTION, in_pad)
    jax.block_until_ready((logp, value, ent))

    r_logp, r_value, r_ent = reference_evaluate(state, action, params)
    assert jnp.allclose(logp, r_logp, atol=1e-4, rtol=1e-4)
    assert jnp.allclose(value, r_value, atol=1e-4, rtol=1e-4)
    assert jnp.allclose(ent, r_ent, atol=1e-4, rtol=1e-4)

    # larger batch: exercises the 2-step "parallel" grid + batch-row padding
    B2 = 400
    k_s2, k_a2 = jax.random.split(jax.random.PRNGKey(1))
    state2 = jax.random.normal(k_s2, (B2, STATE_DIM), jnp.float32)
    action2 = jax.random.randint(k_a2, (B2,), 0, N_ACTION, jnp.int32)
    logp2, value2, ent2 = actor_critic_evaluate(
        state2, action2, packed_w, STATE_DIM, N_ACTION, in_pad)
    jax.block_until_ready((logp2, value2, ent2))
    r2_logp, r2_value, r2_ent = reference_evaluate(state2, action2, params)
    assert jnp.allclose(logp2, r2_logp, atol=1e-4, rtol=1e-4)
    assert jnp.allclose(value2, r2_value, atol=1e-4, rtol=1e-4)
    assert jnp.allclose(ent2, r2_ent, atol=1e-4, rtol=1e-4)

    # explicit small-tile path (multiple grid steps with padding)
    logp3, value3, ent3 = actor_critic_evaluate(
        state2, action2, packed_w, STATE_DIM, N_ACTION, in_pad, block_b=128)
    jax.block_until_ready((logp3, value3, ent3))
    assert jnp.allclose(logp3, r2_logp, atol=1e-4, rtol=1e-4)
    assert jnp.allclose(value3, r2_value, atol=1e-4, rtol=1e-4)
    assert jnp.allclose(ent3, r2_ent, atol=1e-4, rtol=1e-4)

    print("KERNEL_OK")
</pallas_src>

<mosaic_0001>
module attributes {stable_mosaic.version = 11 : i64} {
  func.func @_fused_eval_kernel(%arg0: i32, %arg1: memref<8x8xf32, #tpu.memory_space<vmem>>, %arg2: memref<272x128xf32, #tpu.memory_space<vmem>>, %arg3: memref<8x8xf32, #tpu.memory_space<vmem>>) attributes {dimension_semantics = [#tpu.dimension_semantics<parallel>], iteration_bounds = array<i64: 1>, scalar_prefetch = 0 : i64, scratch_operands = 0 : i64, tpu.core_type = #tpu.core_type<tc>, window_params = [{transform_indices = @transform_0, window_bounds = array<i64: 8, 8>}, {pipeline_mode = #tpu.pipeline_mode<synchronous>, transform_indices = @transform_1, window_bounds = array<i64: 272, 128>}, {transform_indices = @transform_2, window_bounds = array<i64: 8, 8>}]} {
    %c0 = arith.constant 0 : index
    %c0_0 = arith.constant 0 : index
    %0 = vector.load %arg1[%c0, %c0_0] : memref<8x8xf32, #tpu.memory_space<vmem>>, vector<8x8xf32>
    %c0_1 = arith.constant 0 : index
    %c0_2 = arith.constant 0 : index
    %1 = vector.load %arg2[%c0_1, %c0_2] : memref<272x128xf32, #tpu.memory_space<vmem>>, vector<8x128xf32>
    %c8 = arith.constant 8 : index
    %c0_3 = arith.constant 0 : index
    %2 = vector.load %arg2[%c8, %c0_3] : memref<272x128xf32, #tpu.memory_space<vmem>>, vector<128x128xf32>
    %c136 = arith.constant 136 : index
    %c0_4 = arith.constant 0 : index
    %3 = vector.load %arg2[%c136, %c0_4] : memref<272x128xf32, #tpu.memory_space<vmem>>, vector<128x128xf32>
    %c264 = arith.constant 264 : index
    %c0_5 = arith.constant 0 : index
    %4 = vector.load %arg2[%c264, %c0_5] : memref<272x128xf32, #tpu.memory_space<vmem>>, vector<8x128xf32>
    %5 = vector.extract_strided_slice %4 {offsets = [0, 0], sizes = [1, 128], strides = [1, 1]} : vector<8x128xf32> to vector<1x128xf32>
    %6 = vector.extract_strided_slice %4 {offsets = [1, 0], sizes = [1, 128], strides = [1, 1]} : vector<8x128xf32> to vector<1x128xf32>
    %cst = arith.constant dense<0.000000e+00> : vector<8x128xf32>
    %7 = tpu.matmul %0, %1, %cst {dimension_numbers = #tpu.dot_dimension_numbers<[1], [0], [0], [1], [0, 0, 1, 1], [], []>} : vector<8x8xf32>, vector<8x128xf32>, vector<8x128xf32> -> vector<8x128xf32>
    %8 = math.tanh %7 : vector<8x128xf32>
    %cst_6 = arith.constant dense<0.000000e+00> : vector<8x128xf32>
    %9 = tpu.matmul %8, %2, %cst_6 {dimension_numbers = #tpu.dot_dimension_numbers<[1], [0], [0], [1], [0, 0, 1, 1], [], []>} : vector<8x128xf32>, vector<128x128xf32>, vector<8x128xf32> -> vector<8x128xf32>
    %10 = vector.broadcast %5 : vector<1x128xf32> to vector<8x128xf32>
    %11 = arith.addf %9, %10 : vector<8x128xf32>
    %12 = math.tanh %11 : vector<8x128xf32>
    %cst_7 = arith.constant dense<0.000000e+00> : vector<8x128xf32>
    %13 = tpu.matmul %12, %3, %cst_7 {dimension_numbers = #tpu.dot_dimension_numbers<[1], [0], [0], [1], [0, 0, 1, 1], [], []>} : vector<8x128xf32>, vector<128x128xf32>, vector<8x128xf32> -> vector<8x128xf32>
    %14 = vector.broadcast %6 : vector<1x128xf32> to vector<8x128xf32>
    %15 = arith.addf %13, %14 : vector<8x128xf32>
    %16 = tpu.iota {dimensions = array<i32: 1>} : vector<8x128xi32>
    %c2_i32 = arith.constant 2 : i32
    %17 = vector.broadcast %c2_i32 : i32 to vector<8x128xi32>
    %18 = arith.cmpi slt, %16, %17 : vector<8x128xi32>
    %cst_8 = arith.constant -1.000000e+30 : f32
    %19 = vector.broadcast %cst_8 : f32 to vector<8x128xf32>
    %20 = arith.select %18, %15, %19 : vector<8x128xi1>, vector<8x128xf32>
    %cst_9 = arith.constant dense<0xFF800000> : vector<8xf32>
    %21 = vector.multi_reduction <maximumf>, %20, %cst_9 [1] : vector<8x128xf32> to vector<8xf32>
    %22 = vector.shape_cast %21 : vector<8xf32> to vector<8x1xf32>
    %23 = vector.broadcast %22 : vector<8x1xf32> to vector<8x128xf32>
    %24 = arith.subf %15, %23 : vector<8x128xf32>
    %cst_10 = arith.constant -1.000000e+30 : f32
    %25 = vector.broadcast %cst_10 : f32 to vector<8x128xf32>
    %26 = arith.select %18, %24, %25 : vector<8x128xi1>, vector<8x128xf32>
    %27 = math.exp %26 : vector<8x128xf32>
    %cst_11 = arith.constant dense<0.000000e+00> : vector<8xf32>
    %28 = vector.multi_reduction <add>, %27, %cst_11 [1] : vector<8x128xf32> to vector<8xf32>
    %29 = vector.shape_cast %28 : vector<8xf32> to vector<8x1xf32>
    %30 = math.log %29 : vector<8x1xf32>
    %31 = vector.broadcast %30 : vector<8x1xf32> to vector<8x128xf32>
    %32 = arith.subf %26, %31 : vector<8x128xf32>
    %33 = vector.extract_strided_slice %0 {offsets = [0, 3], sizes = [8, 1], strides = [1, 1]} : vector<8x8xf32> to vector<8x1xf32>
    %34 = arith.fptosi %33 : vector<8x1xf32> to vector<8x1xi32>
    %35 = vector.broadcast %34 : vector<8x1xi32> to vector<8x128xi32>
    %36 = arith.cmpi eq, %16, %35 : vector<8x128xi32>
    %cst_12 = arith.constant 0.000000e+00 : f32
    %37 = vector.broadcast %cst_12 : f32 to vector<8x128xf32>
    %38 = arith.select %36, %32, %37 : vector<8x128xi1>, vector<8x128xf32>
    %cst_13 = arith.constant dense<0.000000e+00> : vector<8xf32>
    %39 = vector.multi_reduction <add>, %38, %cst_13 [1] : vector<8x128xf32> to vector<8xf32>
    %40 = vector.shape_cast %39 : vector<8xf32> to vector<8x1xf32>
    %41 = arith.mulf %27, %32 : vector<8x128xf32>
    %cst_14 = arith.constant dense<0.000000e+00> : vector<8xf32>
    %42 = vector.multi_reduction <add>, %41, %cst_14 [1] : vector<8x128xf32> to vector<8xf32>
    %43 = vector.shape_cast %42 : vector<8xf32> to vector<8x1xf32>
    %cst_15 = arith.constant 0.000000e+00 : f32
    %44 = vector.broadcast %cst_15 : f32 to vector<8x1xf32>
    %45 = arith.subf %44, %43 : vector<8x1xf32>
    %46 = tpu.reciprocal %29 : vector<8x1xf32> -> vector<8x1xf32>
    %47 = arith.mulf %45, %46 : vector<8x1xf32>
    %c2_i32_16 = arith.constant 2 : i32
    %48 = vector.broadcast %c2_i32_16 : i32 to vector<8x128xi32>
    %49 = arith.cmpi eq, %16, %48 : vector<8x128xi32>
    %cst_17 = arith.constant 0.000000e+00 : f32
    %50 = vector.broadcast %cst_17 : f32 to vector<8x128xf32>
    %51 = arith.select %49, %15, %50 : vector<8x128xi1>, vector<8x128xf32>
    %cst_18 = arith.constant dense<0.000000e+00> : vector<8xf32>
    %52 = vector.multi_reduction <add>, %51, %cst_18 [1] : vector<8x128xf32> to vector<8xf32>
    %53 = vector.shape_cast %52 : vector<8xf32> to vector<8x1xf32>
    %54 = tpu.iota {dimensions = array<i32: 1>} : vector<8x8xi32>
    %c0_i32 = arith.constant 0 : i32
    %55 = vector.broadcast %c0_i32 : i32 to vector<8x8xi32>
    %56 = arith.cmpi eq, %54, %55 : vector<8x8xi32>
    %cst_19 = arith.constant 0.000000e+00 : f32
    %57 = vector.shape_cast %40 : vector<8x1xf32> to vector<8x1xf32>
    %58 = vector.broadcast %57 : vector<8x1xf32> to vector<8x8xf32>
    %59 = vector.broadcast %cst_19 : f32 to vector<8x8xf32>
    %60 = arith.select %56, %58, %59 : vector<8x8xi1>, vector<8x8xf32>
    %c1_i32 = arith.constant 1 : i32
    %61 = vector.broadcast %c1_i32 : i32 to vector<8x8xi32>
    %62 = arith.cmpi eq, %54, %61 : vector<8x8xi32>
    %cst_20 = arith.constant 0.000000e+00 : f32
    %63 = vector.shape_cast %53 : vector<8x1xf32> to vector<8x1xf32>
    %64 = vector.broadcast %63 : vector<8x1xf32> to vector<8x8xf32>
    %65 = vector.broadcast %cst_20 : f32 to vector<8x8xf32>
    %66 = arith.select %62, %64, %65 : vector<8x8xi1>, vector<8x8xf32>
    %67 = arith.addf %60, %66 : vector<8x8xf32>
    %c2_i32_21 = arith.constant 2 : i32
    %68 = vector.broadcast %c2_i32_21 : i32 to vector<8x8xi32>
    %69 = arith.cmpi eq, %54, %68 : vector<8x8xi32>
    %cst_22 = arith.constant 0.000000e+00 : f32
    %70 = vector.shape_cast %47 : vector<8x1xf32> to vector<8x1xf32>
    %71 = vector.broadcast %70 : vector<8x1xf32> to vector<8x8xf32>
    %72 = vector.broadcast %cst_22 : f32 to vector<8x8xf32>
    %73 = arith.select %69, %71, %72 : vector<8x8xi1>, vector<8x8xf32>
    %74 = arith.addf %67, %73 : vector<8x8xf32>
    %c0_23 = arith.constant 0 : index
    %c0_24 = arith.constant 0 : index
    %75 = vector.load %arg3[%c0_23, %c0_24] : memref<8x8xf32, #tpu.memory_space<vmem>>, vector<8x8xf32>
    tpu.vector_store %arg3[%c0_23, %c0_24], %74 {strides = array<i32>} : memref<8x8xf32, #tpu.memory_space<vmem>>, vector<8x8xf32>,
    return
  }
  func.func @transform_0(%arg0: i32) -> (i32, i32) {
    %c0_i32 = arith.constant 0 : i32
    %c0_i32_0 = arith.constant 0 : i32
    return %arg0, %c0_i32 : i32, i32
  }
  func.func @transform_1(%arg0: i32) -> (i32, i32) {
    %c0_i32 = arith.constant 0 : i32
    %c0_i32_0 = arith.constant 0 : i32
    %c0_i32_1 = arith.constant 0 : i32
    return %c0_i32, %c0_i32_0 : i32, i32
  }
  func.func @transform_2(%arg0: i32) -> (i32, i32) {
    %c0_i32 = arith.constant 0 : i32
    %c0_i32_0 = arith.constant 0 : i32
    return %arg0, %c0_i32 : i32, i32
  }
}

</mosaic_0001>

<llo_original>
// kernel: tpu_custom_call.1
$region0: #{tpu_custom_call.1}
  #allocation0 [shape = 'u32[]', space=smem, size = 0x4, offset = 0x4, fixed_abs, tag = 'smem constant byte address 0x4 - core index']
  #allocation1 [shape = 'u32[72,128]{1,0:T(1,128)}', space=vmem, size = 0x9000, scoped, tag = 'internal scratch']
  %s0 = inlined_call_operand.hbm [shape: f32[8,8], index: 0, kind: input, shape index: {}]
  %s1 = inlined_call_operand.hbm [shape: f32[272,128], index: 1, kind: input, shape index: {}]
  %s2 = inlined_call_operand.hbm [shape: f32[8,8], index: 2, kind: output, shape index: {}]
  %s3 = sld [smem:[#allocation0]]
  $region26: #{tpu_custom_call.1} parent=0
    _
  %s5 = ssub.s32 1, %s3
  %s6 = scalar_select 0, %s5, %s3
  $region1: #{tpu_custom_call.1} parent=0
    #allocation2 [shape = 'u8[4096]{0}', space=vmem, size = 0x1000, scoped, tag = 'input window, operand 0, single buffered']
    #allocation3 [shape = 's32[1]{0}', space=sflag, size = 0x4, scoped, tag = 'scoped memory for tpu_custom_call.1']
    #allocation4 [shape = 's32[1]{0}', space=sflag, size = 0x4, scoped, tag = 'scoped memory for tpu_custom_call.1']
    #allocation5 [shape = 'u8[139264]{0}', space=vmem, size = 0x22000, scoped, tag = 'input window, operand 1, single buffered']
    #allocation6 [shape = 's32[1]{0}', space=sflag, size = 0x4, scoped, tag = 'scoped memory for tpu_custom_call.1']
    #allocation7 [shape = 'u8[4096]{0}', space=vmem, size = 0x1000, scoped, tag = 'output window, operand 0, single buffered']
    %7 = vsyncpa [#allocation3], 0
    %8 = vsyncpa [#allocation6], 0
    %9 = vsyncpa [#allocation4], 0
    // Predicated region
    $region2: #{tpu_custom_call.1} parent=1 // pred_check
      _
    $region3: #{tpu_custom_call.1} parent=1 // pred_check_branch
      %11 = sbr.rel (0) target = $region5
    $region4: #{tpu_custom_call.1} parent=1 // pred_region
      %13 = vsyncadd [#allocation3], 0
      %s15 = sshll.u32 %s0, 4
      %s16 = int_to_ptr.hbm [resolvable:$true] %s15
      %s17 = sshll.u32 [#allocation2], 4
      %s18 = int_to_ptr.vmem [resolvable:$true] %s17
      %20 = dma.hbm_to_vmem [thread:$0]  %s16, 128, %s18, [#allocation3]
    $region5: #{tpu_custom_call.1} parent=1 // pred_fallthru
      _
    // Predicated region
    $region6: #{tpu_custom_call.1} parent=1 // pred_check
      _
    $region7: #{tpu_custom_call.1} parent=1 // pred_check_branch
      %22 = sbr.rel (0) target = $region9
    $region8: #{tpu_custom_call.1} parent=1 // pred_region
      %24 = vsyncadd [#allocation6], 0
      %s25 = sshll.u32 %s1, 4
      %s26 = int_to_ptr.hbm [resolvable:$true] %s25
      %s27 = sshll.u32 [#allocation5], 4
      %s28 = int_to_ptr.vmem [resolvable:$true] %s27
      %33 = dma.hbm_to_vmem [thread:$0]  %s26, 4352, %s28, [#allocation6], 128, 128, 8
    $region9: #{tpu_custom_call.1} parent=1 // pred_fallthru
      _
    // Predicated region
    $region10: #{tpu_custom_call.1} parent=1 // pred_check
      _
    $region11: #{tpu_custom_call.1} parent=1 // pred_check_branch
      %35 = sbr.rel (0) target = $region13
    $region12: #{tpu_custom_call.1} parent=1 // pred_region
      %37 = dma.done [#allocation3], 128
    $region13: #{tpu_custom_call.1} parent=1 // pred_fallthru
      _
    // Predicated region
    $region14: #{tpu_custom_call.1} parent=1 // pred_check
      _
    $region15: #{tpu_custom_call.1} parent=1 // pred_check_branch
      %39 = sbr.rel (0) target = $region17
    $region16: #{tpu_custom_call.1} parent=1 // pred_region
      %41 = dma.done [#allocation6], 4352
    $region17: #{tpu_custom_call.1} parent=1 // pred_fallthru
      _
    %v42 = vld [vmem:[#allocation2] sm:$0xff]
    %v43 = vld [vmem:[#allocation5] sm:$0xff]
    %v44 = vld [vmem:[#allocation5 + $0x8] sm:$0xff]
    %v45 = vld [vmem:[#allocation5 + $0x10] sm:$0xff]
    %v46 = vld [vmem:[#allocation5 + $0x18] sm:$0xff]
    %v47 = vld [vmem:[#allocation5 + $0x20] sm:$0xff]
    %v48 = vld [vmem:[#allocation5 + $0x28] sm:$0xff]
    %v49 = vld [vmem:[#allocation5 + $0x30] sm:$0xff]
    %v50 = vld [vmem:[#allocation5 + $0x38] sm:$0xff]
    %v51 = vld [vmem:[#allocation5 + $0x40] sm:$0xff]
    %v52 = vld [vmem:[#allocation5 + $0x48] sm:$0xff]
    %v53 = vld [vmem:[#allocation5 + $0x50] sm:$0xff]
    %v54 = vld [vmem:[#allocation5 + $0x58] sm:$0xff]
    %v55 = vld [vmem:[#allocation5 + $0x60] sm:$0xff]
    %v56 = vld [vmem:[#allocation5 + $0x68] sm:$0xff]
    %v57 = vld [vmem:[#allocation5 + $0x70] sm:$0xff]
    %v58 = vld [vmem:[#allocation5 + $0x78] sm:$0xff]
    %v59 = vld [vmem:[#allocation5 + $0x80] sm:$0xff]
    %v60 = vld [vmem:[#allocation5 + $0x88] sm:$0xff]
    %v61 = vld [vmem:[#allocation5 + $0x90] sm:$0xff]
    %v62 = vld [vmem:[#allocation5 + $0x98] sm:$0xff]
    %v63 = vld [vmem:[#allocation5 + $0xa0] sm:$0xff]
    %v64 = vld [vmem:[#allocation5 + $0xa8] sm:$0xff]
    %v65 = vld [vmem:[#allocation5 + $0xb0] sm:$0xff]
    %v66 = vld [vmem:[#allocation5 + $0xb8] sm:$0xff]
    %v67 = vld [vmem:[#allocation5 + $0xc0] sm:$0xff]
    %v68 = vld [vmem:[#allocation5 + $0xc8] sm:$0xff]
    %v69 = vld [vmem:[#allocation5 + $0xd0] sm:$0xff]
    %v70 = vld [vmem:[#allocation5 + $0xd8] sm:$0xff]
    %v71 = vld [vmem:[#allocation5 + $0xe0] sm:$0xff]
    %v72 = vld [vmem:[#allocation5 + $0xe8] sm:$0xff]
    %v73 = vld [vmem:[#allocation5 + $0xf0] sm:$0xff]
    %v74 = vld [vmem:[#allocation5 + $0xf8] sm:$0xff]
    %v75 = vld [vmem:[#allocation5 + $0x100] sm:$0xff]
    %v76 = vld [vmem:[#allocation5 + $0x108] sm:$0xff]
    %vm77 = vcmask 64512
    %v79 = vsel %vm77, %v42, 0
    %81 = vmatpush.msra.mxu0 0.0
    %82 = vmatpush.msra.mxu0 0.0
    %83 = vmatpush.msra.mxu0 0.0
    %84 = vmatpush.msra.mxu0 0.0
    %85 = vmatpush.msra.mxu0 0.0
    %86 = vmatpush.msra.mxu0 0.0
    %87 = vmatpush.msra.mxu0 0.0
    %88 = vmatpush.msra.mxu0 0.0
    %89 = vmatpush.msra.mxu0 0.0
    %90 = vmatpush.msra.mxu0 0.0
    %91 = vmatpush.msra.mxu0 0.0
    %92 = vmatpush.msra.mxu0 0.0
    %93 = vmatpush.msra.mxu0 0.0
    %94 = vmatpush.msra.mxu0 0.0
    %95 = vmatpush.msra.mxu0 0.0
    %96 = vmatpush.msra.mxu0 %v43
    %97 = vmatmul.f32.gmra.mxu0 %v79
    %v98 = vpop.f32.mrf.mxu0
    %v99 = vadd.f32 0.0, %v98
    %100 = vdwg.mxu0
    %v101 = vtanh.pop %v99
    %v102 = vperm.slane %v76, 0
    %103 = vmatpush.msra.mxu0 %v59
    %104 = vmatpush.msra.mxu0 %v58
    %105 = vmatpush.msra.mxu0 %v57
    %106 = vmatpush.msra.mxu0 %v56
    %107 = vmatpush.msra.mxu0 %v55
    %108 = vmatpush.msra.mxu0 %v54
    %109 = vmatpush.msra.mxu0 %v53
    %110 = vmatpush.msra.mxu0 %v52
    %111 = vmatpush.msra.mxu0 %v51
    %112 = vmatpush.msra.mxu0 %v50
    %113 = vmatpush.msra.mxu0 %v49
    %114 = vmatpush.msra.mxu0 %v48
    %115 = vmatpush.msra.mxu0 %v47
    %116 = vmatpush.msra.mxu0 %v46
    %117 = vmatpush.msra.mxu0 %v45
    %118 = vmatpush.msra.mxu0 %v44
    %119 = vmatmul.f32.gmra.mxu0 %v101
    %v120 = vpop.f32.mrf.mxu0
    %v121 = vadd.f32 %v102, %v120
    %122 = vdwg.mxu0
    %v123 = vtanh.pop %v121
    %v124 = vperm.slane %v76, 1
    %125 = vmatpush.msra.mxu0 %v75
    %126 = vmatpush.msra.mxu0 %v74
    %127 = vmatpush.msra.mxu0 %v73
    %128 = vmatpush.msra.mxu0 %v72
    %129 = vmatpush.msra.mxu0 %v71
    %130 = vmatpush.msra.mxu0 %v70
    %131 = vmatpush.msra.mxu0 %v69
    %132 = vmatpush.msra.mxu0 %v68
    %133 = vmatpush.msra.mxu0 %v67
    %134 = vmatpush.msra.mxu0 %v66
    %135 = vmatpush.msra.mxu0 %v65
    %136 = vmatpush.msra.mxu0 %v64
    %137 = vmatpush.msra.mxu0 %v63
    %138 = vmatpush.msra.mxu0 %v62
    %139 = vmatpush.msra.mxu0 %v61
    %140 = vmatpush.msra.mxu0 %v60
    %141 = vmatmul.f32.gmra.mxu0 %v123
    %v142 = vpop.f32.mrf.mxu0
    %v143 = vadd.f32 %v124, %v142
    %144 = vdwg.mxu0
    %v145 = vlaneseq
    %v146 = vand.u32 %v145, 127
    %vm147 = vcmp.lt.s32.totalorder %v146, 2
    %v148 = vsel %vm147, %v143, -1e+30
    %149 = vmax.xlane.f32.xlu0 %v148
    %v150 = vpop.xlane.xlu0 %149
    %v151 = vsub.f32 %v143, %v150
    %v152 = vsel %vm147, %v151, -1e+30
    %v153 = vmul.f32 %v152, 1.442695
    %v154 = vpow.pop %v153
    %155 = vadd.xlane.f32.xlu0 %v154
    %v156 = vpop.xlane.xlu0 %155
    %v157 = vlog2.pop %v156
    %v158 = vmul.f32 %v157, 0.6931472
    %v159 = vsub.f32 %v152, %v158
    %v160 = vcvt.f32.s32.to.zero.pseudo %v42
    %161 = vset.pattern.permute.xlu0 3
    %162 = vperm.xlu0 %161, %v160
    %v163 = vpop.permute.xlu0 %162
    %vm164 = vcmp.eq.s32.totalorder %v146, %v163
    %v165 = vsel %vm164, %v159, 0.0
    %166 = vadd.xlane.f32.xlu0 %v165
    %v167 = vpop.xlane.xlu0 %166
    %v168 = vmul.f32 %v154, %v159
    %169 = vadd.xlane.f32.xlu0 %v168
    %v170 = vpop.xlane.xlu0 %169
    %v171 = vsub.f32 0.0, %v170
    %v172 = vrcp.pop %v156
    %v173 = vmul.f32 %v156, %v172
    %v174 = vsub.f32 1.0, %v173
    %v175 = vmul.f32 %v172, %v174
    %v176 = vadd.f32 %v172, %v175
    %vm177 = vweird.f32 %v156
    %vm178 = vweird.f32 %v172
    %vm179 = vmor %vm177, %vm178
    %v180 = vsel %vm179, %v172, %v176
    %v181 = vand.u32 2147483647, %v156
    %vm182 = vcmp.eq.f32.partialorder %v181, 8.507059e+37
    %v183 = vand.u32 %v156, 2147483648
    %v184 = vor.u32 1.1754944e-38, %v183
    %v185 = vsel %vm182, %v184, %v180
    %v186 = vmul.f32 %v171, %v185
    %vm187 = vcmp.eq.s32.totalorder %v146, 2
    %v188 = vsel %vm187, %v143, 0.0
    %189 = vadd.xlane.f32.xlu0 %v188
    %v190 = vpop.xlane.xlu0 %189
    %vm191 = vcmp.eq.s32.totalorder %v146, 0
    %v192 = vsel %vm191, %v167, 0.0
    %vm193 = vcmp.eq.s32.totalorder %v146, 1
    %v194 = vsel %vm193, %v190, 0.0
    %v195 = vadd.f32 %v192, %v194
    %v196 = vsel %vm187, %v186, 0.0
    %v197 = vadd.f32 %v195, %v196
    %198 = vst.msk [vmem:[#allocation7] sm:$0xff] %vm77, %v197
    // Predicated region
    $region18: #{tpu_custom_call.1} parent=1 // pred_check
      _
    $region19: #{tpu_custom_call.1} parent=1 // pred_check_branch
      %200 = sbr.rel (0) target = $region21
    $region20: #{tpu_custom_call.1} parent=1 // pred_region
      %202 = vsyncadd [#allocation4], 0
      %s204 = sshll.u32 [#allocation7], 4
      %s205 = int_to_ptr.vmem [resolvable:$true] %s204
      %s206 = sshll.u32 %s2, 4
      %s207 = int_to_ptr.hbm [resolvable:$true] %s206
      %209 = dma.vmem_to_hbm [thread:$0]  %s205, 128, %s207, [#allocation4]
    $region21: #{tpu_custom_call.1} parent=1 // pred_fallthru
      _
    // Predicated region
    $region22: #{tpu_custom_call.1} parent=1 // pred_check
      _
    $region23: #{tpu_custom_call.1} parent=1 // pred_check_branch
      %211 = sbr.rel (0) target = $region25
    $region24: #{tpu_custom_call.1} parent=1 // pred_region
      %213 = dma.done [#allocation4], 128
    $region25: #{tpu_custom_call.1} parent=1 // pred_fallthru
      _
    %214 = vsyncpa [#allocation3], 1
    %215 = vsyncpa [#allocation6], 1
    %216 = vsyncpa [#allocation4], 1

</llo_original>
